<compile_context>
chip_gen: v7x
topology: tpu7x:2x2x1
jax: 0.10.0
libtpu: 0.0.40
codegen_flags: <defaults>
</compile_context>

<pallas_src>
import math

import jax
import jax.numpy as jnp
from jax.experimental import pallas as pl
from jax.experimental.pallas import tpu as pltpu

EPS = 1e-8
_LOG_EPS = math.log(EPS)
_NEG_INF = -1e30


def _build_kernel(tb: int, inv_b: float, num_classes: int, padded_classes: int,
                  mm_dtype):
    """CMP-loss kernel specialized for row-block size `tb`."""
    mask_padded_classes = padded_classes > num_classes

    def kernel(lblr_ref, logpos_ref,                       # resident (1,B) inputs
               txtn_ref, imgn_ref, tnrm_ref, inrm_ref, lbl_ref,   # (tb,.) tiles
               ttnT_hbm, imnT_hbm, wn_hbm,                 # pl.ANY inputs
               cmpm_ref, cmpc_ref,                         # (1,1,1) f32 outputs
               ttnT, imnT, wn, accm, accc, sems):          # VMEM scratch + DMA sems
        i = pl.program_id(1)

        # -------- once per core: stage resident matmul operands, zero accumulators --------
        @pl.when(i == 0)
        def _init():
            c0 = pltpu.make_async_copy(ttnT_hbm, ttnT, sems.at[0]); c0.start()
            c1 = pltpu.make_async_copy(imnT_hbm, imnT, sems.at[1]); c1.start()
            c2 = pltpu.make_async_copy(wn_hbm, wn, sems.at[2]); c2.start()
            c0.wait(); c1.wait(); c2.wait()
            accm[...] = jnp.zeros_like(accm)
            accc[...] = jnp.zeros_like(accc)

        txtn_blk = txtn_ref[...]                           # (tb, D) normalized text
        imgn_blk = imgn_ref[...]                           # (tb, D) normalized image
        tnrm = tnrm_ref[...]                               # (tb, 1) ||text_r||
        inrm = inrm_ref[...]                               # (tb, 1) ||image_r||
        lbl_blk = lbl_ref[...]                             # (tb, 1) int32

        # ----------------------------- CMPC -----------------------------
        # sum(image * text_norm) = ||image|| * <image_norm, text_norm>, etc.
        cosi = jnp.sum(imgn_blk * txtn_blk, axis=1, keepdims=True)      # (tb, 1)
        s_img = inrm * cosi
        s_txt = tnrm * cosi

        wnv = wn[...]                                       # (D, Cp)
        proj_t = jnp.dot(txtn_blk.astype(mm_dtype), wnv,
                         preferred_element_type=jnp.float32)            # (tb, Cp)
        proj_i = jnp.dot(imgn_blk.astype(mm_dtype), wnv,
                         preferred_element_type=jnp.float32)
        image_logits = s_img * proj_t
        text_logits = s_txt * proj_i

        cls_iota = jax.lax.broadcasted_iota(jnp.int32, (tb, padded_classes), 1)
        onehot = (cls_iota == lbl_blk).astype(jnp.float32)              # (tb, Cp)

        def ce_sum(logits):
            if mask_padded_classes:
                logits = jnp.where(cls_iota < num_classes, logits, _NEG_INF)
            m = jnp.max(logits, axis=1, keepdims=True)
            lse = m + jnp.log(jnp.sum(jnp.exp(logits - m), axis=1, keepdims=True))
            tgt = jnp.sum(onehot * logits, axis=1, keepdims=True)
            return jnp.sum(lse - tgt, axis=0, keepdims=True)            # (1, 1)

        cmpc_blk = ce_sum(image_logits) + ce_sum(text_logits)

        # ----------------------------- CMPM -----------------------------
        mask_blk = lbl_blk == lblr_ref[...]                              # (tb, B)
        log_mask = jnp.where(mask_blk, logpos_ref[...], _LOG_EPS)        # (tb, B)

        def kl_sum(qn_blk, qnrm, keysT_ref):
            # raw_q @ keys_norm.T == ||q|| * (q_norm @ keys_norm.T); keys already transposed.
            sim = qnrm * jnp.dot(qn_blk.astype(mm_dtype), keysT_ref[...],
                                 preferred_element_type=jnp.float32)     # (tb, B)
            m = jnp.max(sim, axis=1, keepdims=True)
            e = jnp.exp(sim - m)
            s = jnp.sum(e, axis=1, keepdims=True)
            pred = e * pl.reciprocal(s)                                  # exact recip
            logp = (sim - m) - jnp.log(s)
            row = jnp.sum(pred * (logp - log_mask), axis=1, keepdims=True)
            return jnp.sum(row, axis=0, keepdims=True)                   # (1, 1)

        cmpm_blk = kl_sum(imgn_blk, inrm, ttnT)
        cmpm_blk = cmpm_blk + kl_sum(txtn_blk, tnrm, imnT)

        accm[...] += cmpm_blk
        accc[...] += cmpc_blk

        # -------- finalize: scale once and write this core's output slot --------
        @pl.when(i == pl.num_programs(1) - 1)
        def _finalize():
            cmpm_ref[...] = (accm[...] * inv_b)[None]
            cmpc_ref[...] = (accc[...] * inv_b)[None]

    return kernel


def _pick_row_block(batch: int, row_block: int) -> int:
    """Largest divisor of `batch` <= row_block that keeps (tb, .) blocks tileable."""
    cap = max(1, min(row_block, batch))
    for t in range(cap, 0, -1):
        if batch % t == 0 and (t % 8 == 0 or t == batch):
            return t
    # TODO(synk): zero-pad the batch (with masked rows) to a sublane-aligned multiple
    # of the row block instead of collapsing to a single full-batch block.
    return batch


def _vmem_cap_bytes() -> int:
    try:
        info = pltpu.get_tpu_info()
        cap = int(getattr(info, "vmem_capacity_bytes"))
        return max(16 * 2 ** 20, (cap * 3) // 4)    # leave Mosaic headroom
    except Exception:
        return 48 * 2 ** 20                          # safe on every generation


def cmp_loss(text_embeddings, image_embeddings, labels, W, *,
             row_block=256, use_bf16_matmul=None):
    """Returns (cmpm_loss, cmpc_loss) as float32 scalars (PyTorch forward order)."""
    text = text_embeddings.astype(jnp.float32)
    image = image_embeddings.astype(jnp.float32)
    W = W.astype(jnp.float32)
    B, D = text.shape
    C = W.shape[1]

    if use_bf16_matmul is None:
        use_bf16_matmul = D >= 512       # bf16 MXU only where it is safe & worthwhile
    mm_dtype = jnp.bfloat16 if use_bf16_matmul else jnp.float32

    tb = _pick_row_block(B, row_block)
    nblk = B // tb
    npar = 2 if nblk % 2 == 0 else 1     # megacore split over the parallel grid axis
    nsteps = nblk // npar

    # ---- cheap preprocessing in plain XLA (norms, normalization, transposes, W_norm,
    # ---- per-column log(1/||mask_row|| + eps)); the kernel keeps the heavy work. ----
    t_nrm = jnp.sqrt(jnp.sum(text * text, axis=1, keepdims=True))        # (B, 1)
    i_nrm = jnp.sqrt(jnp.sum(image * image, axis=1, keepdims=True))
    txtn = text / t_nrm
    imgn = image / i_nrm
    ttnT = txtn.T.astype(mm_dtype)                                       # (D, B)
    imnT = imgn.T.astype(mm_dtype)

    w_nrm = W / jnp.linalg.norm(W, axis=0, keepdims=True)                # (D, C)
    c_pad = max(128, ((C + 127) // 128) * 128)                           # lane-dense logits
    if c_pad > C:
        w_nrm = jnp.pad(w_nrm, ((0, 0), (0, c_pad - C)))
    w_nrm = w_nrm.astype(mm_dtype)

    lbl = labels.astype(jnp.int32)
    lbl_col = lbl.reshape(B, 1)
    lbl_row = lbl.reshape(1, B)
    cnt = jnp.sum((lbl_col == lbl_row).astype(jnp.float32), axis=0, keepdims=True)
    log_pos = jnp.log(1.0 / jnp.sqrt(cnt) + EPS)                         # (1, B)

    inv_b = 1.0 / B
    kernel = _build_kernel(tb, inv_b, C, c_pad, mm_dtype)

    mm_bytes = jnp.dtype(mm_dtype).itemsize
    est = (2 * D * B * mm_bytes + D * c_pad * mm_bytes        # single-copy residents
           + 4 * (2 * tb * D + 3 * tb) * 4                    # double-buffered tiles
           + 8 * tb * B * 4 + 6 * tb * c_pad * 4              # per-step temporaries
           + (2 << 20))
    vmem_limit = int(min(_vmem_cap_bytes(), max(32 * 2 ** 20, est)))

    def resident(shape):
        return pl.BlockSpec(shape, lambda p, i: (0,) * len(shape))

    def row_tiled(ncols):
        return pl.BlockSpec((tb, ncols), lambda p, i: (p * nsteps + i, 0))

    any_spec = pl.BlockSpec(memory_space=pl.ANY)

    cmpm_parts, cmpc_parts = pl.pallas_call(
        kernel,
        out_shape=(jax.ShapeDtypeStruct((npar, 1, 1), jnp.float32),
                   jax.ShapeDtypeStruct((npar, 1, 1), jnp.float32)),
        grid_spec=pltpu.PrefetchScalarGridSpec(
            num_scalar_prefetch=0,
            grid=(npar, nsteps),
            in_specs=[resident((1, B)),       # labels as a row
                      resident((1, B)),       # log(1/||mask_row|| + eps)
                      row_tiled(D),           # normalized text rows
                      row_tiled(D),           # normalized image rows
                      row_tiled(1),           # ||text_r||
                      row_tiled(1),           # ||image_r||
                      row_tiled(1),           # labels column
                      any_spec,               # normalized text, transposed (D,B)
                      any_spec,               # normalized image, transposed (D,B)
                      any_spec],              # W_norm, class-padded (D,Cp)
            out_specs=(pl.BlockSpec((1, 1, 1), lambda p, i: (p, 0, 0)),
                       pl.BlockSpec((1, 1, 1), lambda p, i: (p, 0, 0))),
            scratch_shapes=[
                pltpu.VMEM((D, B), mm_dtype),       # text_norm^T resident copy
                pltpu.VMEM((D, B), mm_dtype),       # image_norm^T resident copy
                pltpu.VMEM((D, c_pad), mm_dtype),   # W_norm resident copy
                pltpu.VMEM((1, 1), jnp.float32),    # cmpm accumulator
                pltpu.VMEM((1, 1), jnp.float32),    # cmpc accumulator
                pltpu.SemaphoreType.DMA((3,)),
            ]),
        compiler_params=pltpu.CompilerParams(
            dimension_semantics=("parallel", "arbitrary"),
            vmem_limit_bytes=vmem_limit),
    )(lbl_row, log_pos, txtn, imgn, t_nrm, i_nrm, lbl_col, ttnT, imnT, w_nrm)

    return jnp.sum(cmpm_parts), jnp.sum(cmpc_parts)


def _reference(text, img, labels, W):
    """Pure-JAX reference mirroring the PyTorch forward exactly."""
    B = text.shape[0]
    img_n = img / jnp.linalg.norm(img, axis=1, keepdims=True)
    txt_n = text / jnp.linalg.norm(text, axis=1, keepdims=True)

    # CMPC
    W_norm = W / jnp.linalg.norm(W, axis=0)
    ipt = jnp.sum(img * txt_n, axis=1, keepdims=True) * txt_n
    tpi = jnp.sum(text * img_n, axis=1, keepdims=True) * img_n
    il = ipt @ W_norm
    tl = tpi @ W_norm

    def ce(logits):
        logp = jax.nn.log_softmax(logits, axis=1)
        return -jnp.mean(logp[jnp.arange(B), labels])

    cmpc = ce(il) + ce(tl)

    # CMPM
    mask = (labels[:, None] == labels[None, :]).astype(jnp.float32)
    mask_norm = mask / jnp.linalg.norm(mask, axis=1)   # PyTorch broadcast quirk
    ipt_m = img @ txt_n.T
    tpi_m = text @ img_n.T

    def kl(logits):
        pred = jax.nn.softmax(logits, axis=1)
        loss = pred * (jax.nn.log_softmax(logits, axis=1) - jnp.log(mask_norm + EPS))
        return jnp.mean(jnp.sum(loss, axis=1))

    cmpm = kl(ipt_m) + kl(tpi_m)
    return cmpm, cmpc


def _run_case(seed, B, D, C, row_block):
    key = jax.random.PRNGKey(seed)
    k_txt, k_img, k_lbl, k_w = jax.random.split(key, 4)

    text_embeddings = jax.random.normal(k_txt, (B, D), dtype=jnp.float32)
    image_embeddings = jax.random.normal(k_img, (B, D), dtype=jnp.float32)
    labels = jax.random.randint(k_lbl, (B,), 0, C, dtype=jnp.int32)

    # Deterministic Xavier-uniform init for W (feature_dim, num_classes), gain=1.
    bound = (6.0 / (D + C)) ** 0.5
    W = jax.random.uniform(k_w, (D, C), minval=-bound, maxval=bound,
                           dtype=jnp.float32)

    cmpm_loss, cmpc_loss = cmp_loss(text_embeddings, image_embeddings, labels, W,
                                    row_block=row_block)
    jax.block_until_ready((cmpm_loss, cmpc_loss))

    ref_cmpm, ref_cmpc = _reference(text_embeddings, image_embeddings, labels, W)
    assert jnp.allclose(cmpm_loss, ref_cmpm, rtol=1e-4, atol=1e-4), (cmpm_loss, ref_cmpm)
    assert jnp.allclose(cmpc_loss, ref_cmpc, rtol=1e-4, atol=1e-4), (cmpc_loss, ref_cmpc)


if __name__ == "__main__":
    # Single block (grid (1,1)): batch=8, feature_dim=32, num_classes=8.
    _run_case(seed=0, B=8, D=32, C=8, row_block=256)
    # Two row blocks -> megacore split (grid (2,1)).
    _run_case(seed=0, B=16, D=32, C=8, row_block=8)
    # Four row blocks -> megacore split + per-core accumulation (grid (2,2)).
    _run_case(seed=0, B=32, D=32, C=8, row_block=8)
    print("KERNEL_OK")
</pallas_src>

<mosaic_0001>
module attributes {stable_mosaic.version = 11 : i64} {
  func.func @kernel(%arg0: i32, %arg1: i32, %arg2: memref<1x8xi32, #tpu.memory_space<vmem>>, %arg3: memref<1x8xf32, #tpu.memory_space<vmem>>, %arg4: memref<8x32xf32, #tpu.memory_space<vmem>>, %arg5: memref<8x32xf32, #tpu.memory_space<vmem>>, %arg6: memref<8x1xf32, #tpu.memory_space<vmem>>, %arg7: memref<8x1xf32, #tpu.memory_space<vmem>>, %arg8: memref<8x1xi32, #tpu.memory_space<vmem>>, %arg9: memref<32x8xf32, #tpu.memory_space<any>>, %arg10: memref<32x8xf32, #tpu.memory_space<any>>, %arg11: memref<32x128xf32, #tpu.memory_space<any>>, %arg12: memref<1x1x1xf32, #tpu.memory_space<vmem>>, %arg13: memref<1x1x1xf32, #tpu.memory_space<vmem>>, %arg14: memref<32x8xf32, #tpu.memory_space<vmem>>, %arg15: memref<32x8xf32, #tpu.memory_space<vmem>>, %arg16: memref<32x128xf32, #tpu.memory_space<vmem>>, %arg17: memref<1x1xf32, #tpu.memory_space<vmem>>, %arg18: memref<1x1xf32, #tpu.memory_space<vmem>>, %arg19: memref<3x!tpu.dma_semaphore, #tpu.memory_space<semaphore_mem>>) attributes {dimension_semantics = [#tpu.dimension_semantics<parallel>, #tpu.dimension_semantics<arbitrary>], iteration_bounds = array<i64: 1, 1>, scalar_prefetch = 0 : i64, scratch_operands = 6 : i64, tpu.core_type = #tpu.core_type<tc>, window_params = [{pipeline_mode = #tpu.pipeline_mode<synchronous>, transform_indices = @transform_0, window_bounds = array<i64: 1, 8>}, {pipeline_mode = #tpu.pipeline_mode<synchronous>, transform_indices = @transform_1, window_bounds = array<i64: 1, 8>}, {transform_indices = @transform_2, window_bounds = array<i64: 8, 32>}, {transform_indices = @transform_3, window_bounds = array<i64: 8, 32>}, {transform_indices = @transform_4, window_bounds = array<i64: 8, 1>}, {transform_indices = @transform_5, window_bounds = array<i64: 8, 1>}, {transform_indices = @transform_6, window_bounds = array<i64: 8, 1>}, {}, {}, {}, {transform_indices = @transform_10, window_bounds = array<i64: 1, 1, 1>}, {transform_indices = @transform_11, window_bounds = array<i64: 1, 1, 1>}]} {
    %c0_i32 = arith.constant 0 : i32
    %0 = arith.cmpi eq, %arg1, %c0_i32 : i32
    %1 = arith.extui %0 : i1 to i32
    %c0_i32_0 = arith.constant 0 : i32
    %2 = arith.cmpi ne, %1, %c0_i32_0 : i32
    scf.if %2 {
      %c0_i32_54 = arith.constant 0 : i32
      %133 = tpu.memref_slice %arg19[%c0_i32_54] : memref<3x!tpu.dma_semaphore, #tpu.memory_space<semaphore_mem>> -> memref<1x!tpu.dma_semaphore, #tpu.memory_space<semaphore_mem>>
      %134 = tpu.memref_squeeze %133 : memref<1x!tpu.dma_semaphore, #tpu.memory_space<semaphore_mem>> -> memref<!tpu.dma_semaphore, #tpu.memory_space<semaphore_mem>>
      tpu.enqueue_dma source(%arg9 : memref<32x8xf32, #tpu.memory_space<any>>) target(%arg14 : memref<32x8xf32, #tpu.memory_space<vmem>>) target_semaphore(%134 : memref<!tpu.dma_semaphore, #tpu.memory_space<semaphore_mem>>)
      %c1_i32 = arith.constant 1 : i32
      %135 = tpu.memref_slice %arg19[%c1_i32] : memref<3x!tpu.dma_semaphore, #tpu.memory_space<semaphore_mem>> -> memref<1x!tpu.dma_semaphore, #tpu.memory_space<semaphore_mem>>
      %136 = tpu.memref_squeeze %135 : memref<1x!tpu.dma_semaphore, #tpu.memory_space<semaphore_mem>> -> memref<!tpu.dma_semaphore, #tpu.memory_space<semaphore_mem>>
      tpu.enqueue_dma source(%arg10 : memref<32x8xf32, #tpu.memory_space<any>>) target(%arg15 : memref<32x8xf32, #tpu.memory_space<vmem>>) target_semaphore(%136 : memref<!tpu.dma_semaphore, #tpu.memory_space<semaphore_mem>>)
      %c2_i32 = arith.constant 2 : i32
      %137 = tpu.memref_slice %arg19[%c2_i32] : memref<3x!tpu.dma_semaphore, #tpu.memory_space<semaphore_mem>> -> memref<1x!tpu.dma_semaphore, #tpu.memory_space<semaphore_mem>>
      %138 = tpu.memref_squeeze %137 : memref<1x!tpu.dma_semaphore, #tpu.memory_space<semaphore_mem>> -> memref<!tpu.dma_semaphore, #tpu.memory_space<semaphore_mem>>
      tpu.enqueue_dma source(%arg11 : memref<32x128xf32, #tpu.memory_space<any>>) target(%arg16 : memref<32x128xf32, #tpu.memory_space<vmem>>) target_semaphore(%138 : memref<!tpu.dma_semaphore, #tpu.memory_space<semaphore_mem>>)
      %c0_i32_55 = arith.constant 0 : i32
      %139 = tpu.memref_slice %arg19[%c0_i32_55] : memref<3x!tpu.dma_semaphore, #tpu.memory_space<semaphore_mem>> -> memref<1x!tpu.dma_semaphore, #tpu.memory_space<semaphore_mem>>
      %140 = tpu.memref_squeeze %139 : memref<1x!tpu.dma_semaphore, #tpu.memory_space<semaphore_mem>> -> memref<!tpu.dma_semaphore, #tpu.memory_space<semaphore_mem>>
      tpu.wait_dma2 semaphore(%140 : memref<!tpu.dma_semaphore, #tpu.memory_space<semaphore_mem>>) src(%arg9 : memref<32x8xf32, #tpu.memory_space<any>>) dst(%arg14 : memref<32x8xf32, #tpu.memory_space<vmem>>)
      %c1_i32_56 = arith.constant 1 : i32
      %141 = tpu.memref_slice %arg19[%c1_i32_56] : memref<3x!tpu.dma_semaphore, #tpu.memory_space<semaphore_mem>> -> memref<1x!tpu.dma_semaphore, #tpu.memory_space<semaphore_mem>>
      %142 = tpu.memref_squeeze %141 : memref<1x!tpu.dma_semaphore, #tpu.memory_space<semaphore_mem>> -> memref<!tpu.dma_semaphore, #tpu.memory_space<semaphore_mem>>
      tpu.wait_dma2 semaphore(%142 : memref<!tpu.dma_semaphore, #tpu.memory_space<semaphore_mem>>) src(%arg10 : memref<32x8xf32, #tpu.memory_space<any>>) dst(%arg15 : memref<32x8xf32, #tpu.memory_space<vmem>>)
      %c2_i32_57 = arith.constant 2 : i32
      %143 = tpu.memref_slice %arg19[%c2_i32_57] : memref<3x!tpu.dma_semaphore, #tpu.memory_space<semaphore_mem>> -> memref<1x!tpu.dma_semaphore, #tpu.memory_space<semaphore_mem>>
      %144 = tpu.memref_squeeze %143 : memref<1x!tpu.dma_semaphore, #tpu.memory_space<semaphore_mem>> -> memref<!tpu.dma_semaphore, #tpu.memory_space<semaphore_mem>>
      tpu.wait_dma2 semaphore(%144 : memref<!tpu.dma_semaphore, #tpu.memory_space<semaphore_mem>>) src(%arg11 : memref<32x128xf32, #tpu.memory_space<any>>) dst(%arg16 : memref<32x128xf32, #tpu.memory_space<vmem>>)
      %cst_58 = arith.constant 0.000000e+00 : f32
      %145 = vector.broadcast %cst_58 : f32 to vector<1x1xf32>
      %c0_59 = arith.constant 0 : index
      %c0_60 = arith.constant 0 : index
      %146 = vector.load %arg17[%c0_59, %c0_60] : memref<1x1xf32, #tpu.memory_space<vmem>>, vector<1x1xf32>
      tpu.vector_store %arg17[%c0_59, %c0_60], %145 {strides = array<i32>} : memref<1x1xf32, #tpu.memory_space<vmem>>, vector<1x1xf32>,
      %cst_61 = arith.constant 0.000000e+00 : f32
      %147 = vector.broadcast %cst_61 : f32 to vector<1x1xf32>
      %c0_62 = arith.constant 0 : index
      %c0_63 = arith.constant 0 : index
      %148 = vector.load %arg18[%c0_62, %c0_63] : memref<1x1xf32, #tpu.memory_space<vmem>>, vector<1x1xf32>
      tpu.vector_store %arg18[%c0_62, %c0_63], %147 {strides = array<i32>} : memref<1x1xf32, #tpu.memory_space<vmem>>, vector<1x1xf32>,
    } else {
    }
    %c0 = arith.constant 0 : index
    %c0_1 = arith.constant 0 : index
    %3 = vector.load %arg4[%c0, %c0_1] : memref<8x32xf32, #tpu.memory_space<vmem>>, vector<8x32xf32>
    %c0_2 = arith.constant 0 : index
    %c0_3 = arith.constant 0 : index
    %4 = vector.load %arg5[%c0_2, %c0_3] : memref<8x32xf32, #tpu.memory_space<vmem>>, vector<8x32xf32>
    %c0_4 = arith.constant 0 : index
    %c0_5 = arith.constant 0 : index
    %5 = vector.load %arg6[%c0_4, %c0_5] : memref<8x1xf32, #tpu.memory_space<vmem>>, vector<8x1xf32>
    %c0_6 = arith.constant 0 : index
    %c0_7 = arith.constant 0 : index
    %6 = vector.load %arg7[%c0_6, %c0_7] : memref<8x1xf32, #tpu.memory_space<vmem>>, vector<8x1xf32>
    %c0_8 = arith.constant 0 : index
    %c0_9 = arith.constant 0 : index
    %7 = vector.load %arg8[%c0_8, %c0_9] : memref<8x1xi32, #tpu.memory_space<vmem>>, vector<8x1xi32>
    %8 = arith.mulf %4, %3 : vector<8x32xf32>
    %cst = arith.constant dense<0.000000e+00> : vector<8xf32>
    %9 = vector.multi_reduction <add>, %8, %cst [1] : vector<8x32xf32> to vector<8xf32>
    %10 = vector.shape_cast %9 : vector<8xf32> to vector<8x1xf32>
    %11 = arith.mulf %6, %10 : vector<8x1xf32>
    %12 = arith.mulf %5, %10 : vector<8x1xf32>
    %c0_10 = arith.constant 0 : index
    %c0_11 = arith.constant 0 : index
    %13 = vector.load %arg16[%c0_10, %c0_11] : memref<32x128xf32, #tpu.memory_space<vmem>>, vector<32x128xf32>
    %cst_12 = arith.constant dense<0.000000e+00> : vector<8x128xf32>
    %14 = tpu.matmul %3, %13, %cst_12 {dimension_numbers = #tpu.dot_dimension_numbers<[1], [0], [0], [1], [0, 0, 1, 1], [], []>} : vector<8x32xf32>, vector<32x128xf32>, vector<8x128xf32> -> vector<8x128xf32>
    %cst_13 = arith.constant dense<0.000000e+00> : vector<8x128xf32>
    %15 = tpu.matmul %4, %13, %cst_13 {dimension_numbers = #tpu.dot_dimension_numbers<[1], [0], [0], [1], [0, 0, 1, 1], [], []>} : vector<8x32xf32>, vector<32x128xf32>, vector<8x128xf32> -> vector<8x128xf32>
    %16 = vector.broadcast %11 : vector<8x1xf32> to vector<8x128xf32>
    %17 = arith.mulf %16, %14 : vector<8x128xf32>
    %18 = vector.broadcast %12 : vector<8x1xf32> to vector<8x128xf32>
    %19 = arith.mulf %18, %15 : vector<8x128xf32>
    %20 = tpu.iota {dimensions = array<i32: 1>} : vector<8x128xi32>
    %21 = vector.broadcast %7 : vector<8x1xi32> to vector<8x128xi32>
    %22 = arith.cmpi eq, %20, %21 : vector<8x128xi32>
    %23 = arith.extui %22 : vector<8x128xi1> to vector<8x128xi32>
    %24 = arith.sitofp %23 : vector<8x128xi32> to vector<8x128xf32>
    %c8_i32 = arith.constant 8 : i32
    %25 = vector.broadcast %c8_i32 : i32 to vector<8x128xi32>
    %26 = arith.cmpi slt, %20, %25 : vector<8x128xi32>
    %cst_14 = arith.constant -1.000000e+30 : f32
    %27 = vector.broadcast %cst_14 : f32 to vector<8x128xf32>
    %28 = arith.select %26, %17, %27 : vector<8x128xi1>, vector<8x128xf32>
    %cst_15 = arith.constant dense<0xFF800000> : vector<8xf32>
    %29 = vector.multi_reduction <maximumf>, %28, %cst_15 [1] : vector<8x128xf32> to vector<8xf32>
    %30 = vector.shape_cast %29 : vector<8xf32> to vector<8x1xf32>
    %31 = vector.broadcast %30 : vector<8x1xf32> to vector<8x128xf32>
    %32 = arith.subf %28, %31 : vector<8x128xf32>
    %33 = math.exp %32 : vector<8x128xf32>
    %cst_16 = arith.constant dense<0.000000e+00> : vector<8xf32>
    %34 = vector.multi_reduction <add>, %33, %cst_16 [1] : vector<8x128xf32> to vector<8xf32>
    %35 = vector.shape_cast %34 : vector<8xf32> to vector<8x1xf32>
    %36 = math.log %35 : vector<8x1xf32>
    %37 = arith.addf %30, %36 : vector<8x1xf32>
    %38 = arith.mulf %24, %28 : vector<8x128xf32>
    %cst_17 = arith.constant dense<0.000000e+00> : vector<8xf32>
    %39 = vector.multi_reduction <add>, %38, %cst_17 [1] : vector<8x128xf32> to vector<8xf32>
    %40 = vector.shape_cast %39 : vector<8xf32> to vector<8x1xf32>
    %41 = arith.subf %37, %40 : vector<8x1xf32>
    %cst_18 = arith.constant dense<0.000000e+00> : vector<1xf32>
    %42 = vector.multi_reduction <add>, %41, %cst_18 [0] : vector<8x1xf32> to vector<1xf32>
    %43 = vector.shape_cast %42 : vector<1xf32> to vector<1x1xf32>
    %c8_i32_19 = arith.constant 8 : i32
    %44 = vector.broadcast %c8_i32_19 : i32 to vector<8x128xi32>
    %45 = arith.cmpi slt, %20, %44 : vector<8x128xi32>
    %cst_20 = arith.constant -1.000000e+30 : f32
    %46 = vector.broadcast %cst_20 : f32 to vector<8x128xf32>
    %47 = arith.select %45, %19, %46 : vector<8x128xi1>, vector<8x128xf32>
    %cst_21 = arith.constant dense<0xFF800000> : vector<8xf32>
    %48 = vector.multi_reduction <maximumf>, %47, %cst_21 [1] : vector<8x128xf32> to vector<8xf32>
    %49 = vector.shape_cast %48 : vector<8xf32> to vector<8x1xf32>
    %50 = vector.broadcast %49 : vector<8x1xf32> to vector<8x128xf32>
    %51 = arith.subf %47, %50 : vector<8x128xf32>
    %52 = math.exp %51 : vector<8x128xf32>
    %cst_22 = arith.constant dense<0.000000e+00> : vector<8xf32>
    %53 = vector.multi_reduction <add>, %52, %cst_22 [1] : vector<8x128xf32> to vector<8xf32>
    %54 = vector.shape_cast %53 : vector<8xf32> to vector<8x1xf32>
    %55 = math.log %54 : vector<8x1xf32>
    %56 = arith.addf %49, %55 : vector<8x1xf32>
    %57 = arith.mulf %24, %47 : vector<8x128xf32>
    %cst_23 = arith.constant dense<0.000000e+00> : vector<8xf32>
    %58 = vector.multi_reduction <add>, %57, %cst_23 [1] : vector<8x128xf32> to vector<8xf32>
    %59 = vector.shape_cast %58 : vector<8xf32> to vector<8x1xf32>
    %60 = arith.subf %56, %59 : vector<8x1xf32>
    %cst_24 = arith.constant dense<0.000000e+00> : vector<1xf32>
    %61 = vector.multi_reduction <add>, %60, %cst_24 [0] : vector<8x1xf32> to vector<1xf32>
    %62 = vector.shape_cast %61 : vector<1xf32> to vector<1x1xf32>
    %63 = arith.addf %43, %62 : vector<1x1xf32>
    %c0_25 = arith.constant 0 : index
    %c0_26 = arith.constant 0 : index
    %64 = vector.load %arg2[%c0_25, %c0_26] : memref<1x8xi32, #tpu.memory_space<vmem>>, vector<1x8xi32>
    %65 = vector.broadcast %7 : vector<8x1xi32> to vector<8x8xi32>
    %66 = vector.broadcast %64 : vector<1x8xi32> to vector<8x8xi32>
    %67 = arith.cmpi eq, %65, %66 : vector<8x8xi32>
    %c0_27 = arith.constant 0 : index
    %c0_28 = arith.constant 0 : index
    %68 = vector.load %arg3[%c0_27, %c0_28] : memref<1x8xf32, #tpu.memory_space<vmem>>, vector<1x8xf32>
    %cst_29 = arith.constant -18.420681 : f32
    %69 = vector.shape_cast %68 : vector<1x8xf32> to vector<1x8xf32>
    %70 = vector.broadcast %69 : vector<1x8xf32> to vector<8x8xf32>
    %71 = vector.broadcast %cst_29 : f32 to vector<8x8xf32>
    %72 = arith.select %67, %70, %71 : vector<8x8xi1>, vector<8x8xf32>
    %c0_30 = arith.constant 0 : index
    %c0_31 = arith.constant 0 : index
    %73 = vector.load %arg14[%c0_30, %c0_31] : memref<32x8xf32, #tpu.memory_space<vmem>>, vector<32x8xf32>
    %cst_32 = arith.constant dense<0.000000e+00> : vector<8x8xf32>
    %74 = tpu.matmul %4, %73, %cst_32 {dimension_numbers = #tpu.dot_dimension_numbers<[1], [0], [0], [1], [0, 0, 1, 1], [], []>} : vector<8x32xf32>, vector<32x8xf32>, vector<8x8xf32> -> vector<8x8xf32>
    %75 = vector.broadcast %6 : vector<8x1xf32> to vector<8x8xf32>
    %76 = arith.mulf %75, %74 : vector<8x8xf32>
    %cst_33 = arith.constant dense<0xFF800000> : vector<8xf32>
    %77 = vector.multi_reduction <maximumf>, %76, %cst_33 [1] : vector<8x8xf32> to vector<8xf32>
    %78 = vector.shape_cast %77 : vector<8xf32> to vector<8x1xf32>
    %79 = vector.broadcast %78 : vector<8x1xf32> to vector<8x8xf32>
    %80 = arith.subf %76, %79 : vector<8x8xf32>
    %81 = math.exp %80 : vector<8x8xf32>
    %cst_34 = arith.constant dense<0.000000e+00> : vector<8xf32>
    %82 = vector.multi_reduction <add>, %81, %cst_34 [1] : vector<8x8xf32> to vector<8xf32>
    %83 = vector.shape_cast %82 : vector<8xf32> to vector<8x1xf32>
    %84 = tpu.reciprocal %83 : vector<8x1xf32> -> vector<8x1xf32>
    %85 = vector.broadcast %84 : vector<8x1xf32> to vector<8x8xf32>
    %86 = arith.mulf %81, %85 : vector<8x8xf32>
    %87 = vector.broadcast %78 : vector<8x1xf32> to vector<8x8xf32>
    %88 = arith.subf %76, %87 : vector<8x8xf32>
    %89 = math.log %83 : vector<8x1xf32>
    %90 = vector.broadcast %89 : vector<8x1xf32> to vector<8x8xf32>
    %91 = arith.subf %88, %90 : vector<8x8xf32>
    %92 = arith.subf %91, %72 : vector<8x8xf32>
    %93 = arith.mulf %86, %92 : vector<8x8xf32>
    %cst_35 = arith.constant dense<0.000000e+00> : vector<8xf32>
    %94 = vector.multi_reduction <add>, %93, %cst_35 [1] : vector<8x8xf32> to vector<8xf32>
    %95 = vector.shape_cast %94 : vector<8xf32> to vector<8x1xf32>
    %cst_36 = arith.constant dense<0.000000e+00> : vector<1xf32>
    %96 = vector.multi_reduction <add>, %95, %cst_36 [0] : vector<8x1xf32> to vector<1xf32>
    %97 = vector.shape_cast %96 : vector<1xf32> to vector<1x1xf32>
    %c0_37 = arith.constant 0 : index
    %c0_38 = arith.constant 0 : index
    %98 = vector.load %arg15[%c0_37, %c0_38] : memref<32x8xf32, #tpu.memory_space<vmem>>, vector<32x8xf32>
    %cst_39 = arith.constant dense<0.000000e+00> : vector<8x8xf32>
    %99 = tpu.matmul %3, %98, %cst_39 {dimension_numbers = #tpu.dot_dimension_numbers<[1], [0], [0], [1], [0, 0, 1, 1], [], []>} : vector<8x32xf32>, vector<32x8xf32>, vector<8x8xf32> -> vector<8x8xf32>
    %100 = vector.broadcast %5 : vector<8x1xf32> to vector<8x8xf32>
    %101 = arith.mulf %100, %99 : vector<8x8xf32>
    %cst_40 = arith.constant dense<0xFF800000> : vector<8xf32>
    %102 = vector.multi_reduction <maximumf>, %101, %cst_40 [1] : vector<8x8xf32> to vector<8xf32>
    %103 = vector.shape_cast %102 : vector<8xf32> to vector<8x1xf32>
    %104 = vector.broadcast %103 : vector<8x1xf32> to vector<8x8xf32>
    %105 = arith.subf %101, %104 : vector<8x8xf32>
    %106 = math.exp %105 : vector<8x8xf32>
    %cst_41 = arith.constant dense<0.000000e+00> : vector<8xf32>
    %107 = vector.multi_reduction <add>, %106, %cst_41 [1] : vector<8x8xf32> to vector<8xf32>
    %108 = vector.shape_cast %107 : vector<8xf32> to vector<8x1xf32>
    %109 = tpu.reciprocal %108 : vector<8x1xf32> -> vector<8x1xf32>
    %110 = vector.broadcast %109 : vector<8x1xf32> to vector<8x8xf32>
    %111 = arith.mulf %106, %110 : vector<8x8xf32>
    %112 = vector.broadcast %103 : vector<8x1xf32> to vector<8x8xf32>
    %113 = arith.subf %101, %112 : vector<8x8xf32>
    %114 = math.log %108 : vector<8x1xf32>
    %115 = vector.broadcast %114 : vector<8x1xf32> to vector<8x8xf32>
    %116 = arith.subf %113, %115 : vector<8x8xf32>
    %117 = arith.subf %116, %72 : vector<8x8xf32>
    %118 = arith.mulf %111, %117 : vector<8x8xf32>
    %cst_42 = arith.constant dense<0.000000e+00> : vector<8xf32>
    %119 = vector.multi_reduction <add>, %118, %cst_42 [1] : vector<8x8xf32> to vector<8xf32>
    %120 = vector.shape_cast %119 : vector<8xf32> to vector<8x1xf32>
    %cst_43 = arith.constant dense<0.000000e+00> : vector<1xf32>
    %121 = vector.multi_reduction <add>, %120, %cst_43 [0] : vector<8x1xf32> to vector<1xf32>
    %122 = vector.shape_cast %121 : vector<1xf32> to vector<1x1xf32>
    %123 = arith.addf %97, %122 : vector<1x1xf32>
    %c0_44 = arith.constant 0 : index
    %c0_45 = arith.constant 0 : index
    %124 = vector.load %arg17[%c0_44, %c0_45] : memref<1x1xf32, #tpu.memory_space<vmem>>, vector<1x1xf32>
    %125 = arith.addf %124, %123 : vector<1x1xf32>
    %c0_46 = arith.constant 0 : index
    %c0_47 = arith.constant 0 : index
    %126 = vector.load %arg17[%c0_46, %c0_47] : memref<1x1xf32, #tpu.memory_space<vmem>>, vector<1x1xf32>
    tpu.vector_store %arg17[%c0_46, %c0_47], %125 {strides = array<i32>} : memref<1x1xf32, #tpu.memory_space<vmem>>, vector<1x1xf32>,
    %c0_48 = arith.constant 0 : index
    %c0_49 = arith.constant 0 : index
    %127 = vector.load %arg18[%c0_48, %c0_49] : memref<1x1xf32, #tpu.memory_space<vmem>>, vector<1x1xf32>
    %128 = arith.addf %127, %63 : vector<1x1xf32>
    %c0_50 = arith.constant 0 : index
    %c0_51 = arith.constant 0 : index
    %129 = vector.load %arg18[%c0_50, %c0_51] : memref<1x1xf32, #tpu.memory_space<vmem>>, vector<1x1xf32>
    tpu.vector_store %arg18[%c0_50, %c0_51], %128 {strides = array<i32>} : memref<1x1xf32, #tpu.memory_space<vmem>>, vector<1x1xf32>,
    %c0_i32_52 = arith.constant 0 : i32
    %130 = arith.cmpi eq, %arg1, %c0_i32_52 : i32
    %131 = arith.extui %130 : i1 to i32
    %c0_i32_53 = arith.constant 0 : i32
    %132 = arith.cmpi ne, %131, %c0_i32_53 : i32
    scf.if %132 {
      %c0_54 = arith.constant 0 : index
      %c0_55 = arith.constant 0 : index
      %133 = vector.load %arg17[%c0_54, %c0_55] : memref<1x1xf32, #tpu.memory_space<vmem>>, vector<1x1xf32>
      %cst_56 = arith.constant 1.250000e-01 : f32
      %134 = vector.broadcast %cst_56 : f32 to vector<1x1xf32>
      %135 = arith.mulf %133, %134 : vector<1x1xf32>
      %136 = vector.shape_cast %135 : vector<1x1xf32> to vector<1x1x1xf32>
      %c0_57 = arith.constant 0 : index
      %c0_58 = arith.constant 0 : index
      %c0_59 = arith.constant 0 : index
      %137 = vector.load %arg12[%c0_57, %c0_58, %c0_59] : memref<1x1x1xf32, #tpu.memory_space<vmem>>, vector<1x1x1xf32>
      tpu.vector_store %arg12[%c0_57, %c0_58, %c0_59], %136 {strides = array<i32>} : memref<1x1x1xf32, #tpu.memory_space<vmem>>, vector<1x1x1xf32>,
      %c0_60 = arith.constant 0 : index
      %c0_61 = arith.constant 0 : index
      %138 = vector.load %arg18[%c0_60, %c0_61] : memref<1x1xf32, #tpu.memory_space<vmem>>, vector<1x1xf32>
      %cst_62 = arith.constant 1.250000e-01 : f32
      %139 = vector.broadcast %cst_62 : f32 to vector<1x1xf32>
      %140 = arith.mulf %138, %139 : vector<1x1xf32>
      %141 = vector.shape_cast %140 : vector<1x1xf32> to vector<1x1x1xf32>
      %c0_63 = arith.constant 0 : index
      %c0_64 = arith.constant 0 : index
      %c0_65 = arith.constant 0 : index
      %142 = vector.load %arg13[%c0_63, %c0_64, %c0_65] : memref<1x1x1xf32, #tpu.memory_space<vmem>>, vector<1x1x1xf32>
      tpu.vector_store %arg13[%c0_63, %c0_64, %c0_65], %141 {strides = array<i32>} : memref<1x1x1xf32, #tpu.memory_space<vmem>>, vector<1x1x1xf32>,
    } else {
    }
    return
  }
  func.func @transform_0(%arg0: i32, %arg1: i32) -> (i32, i32) {
    %c0_i32 = arith.constant 0 : i32
    %c0_i32_0 = arith.constant 0 : i32
    %c0_i32_1 = arith.constant 0 : i32
    return %c0_i32, %c0_i32_0 : i32, i32
  }
  func.func @transform_1(%arg0: i32, %arg1: i32) -> (i32, i32) {
    %c0_i32 = arith.constant 0 : i32
    %c0_i32_0 = arith.constant 0 : i32
    %c0_i32_1 = arith.constant 0 : i32
    return %c0_i32, %c0_i32_0 : i32, i32
  }
  func.func @transform_2(%arg0: i32, %arg1: i32) -> (i32, i32) {
    %c1_i32 = arith.constant 1 : i32
    %0 = arith.muli %arg0, %c1_i32 : i32
    %1 = arith.addi %0, %arg1 : i32
    %c0_i32 = arith.constant 0 : i32
    %c0_i32_0 = arith.constant 0 : i32
    return %1, %c0_i32 : i32, i32
  }
  func.func @transform_3(%arg0: i32, %arg1: i32) -> (i32, i32) {
    %c1_i32 = arith.constant 1 : i32
    %0 = arith.muli %arg0, %c1_i32 : i32
    %1 = arith.addi %0, %arg1 : i32
    %c0_i32 = arith.constant 0 : i32
    %c0_i32_0 = arith.constant 0 : i32
    return %1, %c0_i32 : i32, i32
  }
  func.func @transform_4(%arg0: i32, %arg1: i32) -> (i32, i32) {
    %c1_i32 = arith.constant 1 : i32
    %0 = arith.muli %arg0, %c1_i32 : i32
    %1 = arith.addi %0, %arg1 : i32
    %c0_i32 = arith.constant 0 : i32
    %c0_i32_0 = arith.constant 0 : i32
    return %1, %c0_i32 : i32, i32
  }
  func.func @transform_5(%arg0: i32, %arg1: i32) -> (i32, i32) {
    %c1_i32 = arith.constant 1 : i32
    %0 = arith.muli %arg0, %c1_i32 : i32
    %1 = arith.addi %0, %arg1 : i32
    %c0_i32 = arith.constant 0 : i32
    %c0_i32_0 = arith.constant 0 : i32
    return %1, %c0_i32 : i32, i32
  }
  func.func @transform_6(%arg0: i32, %arg1: i32) -> (i32, i32) {
    %c1_i32 = arith.constant 1 : i32
    %0 = arith.muli %arg0, %c1_i32 : i32
    %1 = arith.addi %0, %arg1 : i32
    %c0_i32 = arith.constant 0 : i32
    %c0_i32_0 = arith.constant 0 : i32
    return %1, %c0_i32 : i32, i32
  }
  func.func @transform_10(%arg0: i32, %arg1: i32) -> (i32, i32, i32) {
    %c0_i32 = arith.constant 0 : i32
    %c0_i32_0 = arith.constant 0 : i32
    %c0_i32_1 = arith.constant 0 : i32
    return %arg0, %c0_i32, %c0_i32_0 : i32, i32, i32
  }
  func.func @transform_11(%arg0: i32, %arg1: i32) -> (i32, i32, i32) {
    %c0_i32 = arith.constant 0 : i32
    %c0_i32_0 = arith.constant 0 : i32
    %c0_i32_1 = arith.constant 0 : i32
    return %arg0, %c0_i32, %c0_i32_0 : i32, i32, i32
  }
}

</mosaic_0001>

<llo_original>
// kernel: tpu_custom_call.1
$region0: #{tpu_custom_call.1}
  #allocation0 [shape = 'u32[]', space=smem, size = 0x4, offset = 0x4, fixed_abs, tag = 'smem constant byte address 0x4 - core index']
  #allocation1 [shape = 'u32[144,128]{1,0:T(1,128)}', space=vmem, size = 0x12000, scoped, tag = 'internal scratch']
  #allocation2 [shape = 'f32[32,8]{1,0:T(8,128)}', space=vmem, size = 0x4000, scoped, tag = 'scratch operand']
  #allocation3 [shape = 'f32[32,8]{1,0:T(8,128)}', space=vmem, size = 0x4000, scoped, tag = 'scratch operand']
  #allocation4 [shape = 'f32[32,128]{1,0:T(8,128)}', space=vmem, size = 0x4000, scoped, tag = 'scratch operand']
  #allocation5 [shape = 'f32[1,1]{1,0:T(1,128)}', space=vmem, size = 0x200, scoped, tag = 'scratch operand']
  #allocation6 [shape = 'f32[1,1]{1,0:T(1,128)}', space=vmem, size = 0x200, scoped, tag = 'scratch operand']
  #allocation7 [shape = 's32[3]{0}', space=sflag, size = 0xc, scoped, tag = 'scratch operand']
  #allocation12 [shape = 's32[]', space=sflag, size = 0x4, offset = 0, fixed_abs, tag = 'sflag constant byte address 0x0 - dummy sync flag']
  #allocation13 [shape = 's32[]', space=sflag, size = 0x4, offset = 0, fixed_abs, tag = 'sflag constant byte address 0x0 - dummy sync flag']
  #allocation14 [shape = 's32[]', space=sflag, size = 0x4, offset = 0, fixed_abs, tag = 'sflag constant byte address 0x0 - dummy sync flag']
  %s0 = inlined_call_operand.vmem [shape: s32[1,8], index: 0, kind: input, shape index: {}]
  %s1 = inlined_call_operand.vmem [shape: f32[1,8], index: 1, kind: input, shape index: {}]
  %s2 = inlined_call_operand.vmem [shape: f32[8,32], index: 2, kind: input, shape index: {}]
  %s3 = inlined_call_operand.vmem [shape: f32[8,32], index: 3, kind: input, shape index: {}]
  %s4 = inlined_call_operand.vmem [shape: f32[8,1], index: 4, kind: input, shape index: {}]
  %s5 = inlined_call_operand.vmem [shape: f32[8,1], index: 5, kind: input, shape index: {}]
  %s6 = inlined_call_operand.vmem [shape: s32[8,1], index: 6, kind: input, shape index: {}]
  %s7 = inlined_call_operand.vmem [shape: f32[32,8], index: 7, kind: input, shape index: {}]
  %s8 = inlined_call_operand.vmem [shape: f32[32,8], index: 8, kind: input, shape index: {}]
  %s9 = inlined_call_operand.vmem [shape: f32[32,128], index: 9, kind: input, shape index: {}]
  %s10 = inlined_call_operand.hbm [shape: f32[1,1,1], index: 10, kind: output, shape index: {0}]
  %s11 = inlined_call_operand.hbm [shape: f32[1,1,1], index: 11, kind: output, shape index: {1}]
  %12 = xla_tuple %s10, %s11
  %s13 = sld [smem:[#allocation0]]
  $region156: #{tpu_custom_call.1} parent=0
    _
  %s15 = ssub.s32 1, %s13
  %s16 = scalar_select 0, %s15, %s13
  $region1: #{tpu_custom_call.1} parent=0
    #allocation8 [shape = 'u8[512]{0}', space=vmem, size = 0x400, scoped, tag = 'output window, operand 0, single buffered']
    #allocation9 [shape = 's32[1]{0}', space=sflag, size = 0x4, scoped, tag = 'scoped memory for tpu_custom_call.1']
    #allocation10 [shape = 'u8[512]{0}', space=vmem, size = 0x400, scoped, tag = 'output window, operand 1, single buffered']
    #allocation11 [shape = 's32[1]{0}', space=sflag, size = 0x4, scoped, tag = 'scoped memory for tpu_custom_call.1']
    %17 = vsyncpa [#allocation9], 0
    %18 = vsyncpa [#allocation11], 0
    // Predicated region
    $region2: #{tpu_custom_call.1} parent=1 // pred_check
      _
    $region3: #{tpu_custom_call.1} parent=1 // pred_check_branch
      %20 = sbr.rel (0) target = $region5
    $region4: #{tpu_custom_call.1} parent=1 // pred_region
      _
    $region5: #{tpu_custom_call.1} parent=1 // pred_fallthru
      _
    // Predicated region
    $region6: #{tpu_custom_call.1} parent=1 // pred_check
      _
    $region7: #{tpu_custom_call.1} parent=1 // pred_check_branch
      %22 = sbr.rel (0) target = $region9
    $region8: #{tpu_custom_call.1} parent=1 // pred_region
      _
    $region9: #{tpu_custom_call.1} parent=1 // pred_fallthru
      _
    // Predicated region
    $region10: #{tpu_custom_call.1} parent=1 // pred_check
      _
    $region11: #{tpu_custom_call.1} parent=1 // pred_check_branch
      %24 = sbr.rel (0) target = $region13
    $region12: #{tpu_custom_call.1} parent=1 // pred_region
      %s25 = sadd.s32 0, 0
      %p26 = scmp.lt.s32.totalorder %s25, 0
      %s27 = scalar_select %p26, %s25, 0
      %s28 = smul.addr %s27, 8
      %s29 = scalar_lea.vmem %s2, %s28
      %s30 = sadd.s32 0, 0
    $region13: #{tpu_custom_call.1} parent=1 // pred_fallthru
      _
    // Predicated region
    $region14: #{tpu_custom_call.1} parent=1 // pred_check
      _
    $region15: #{tpu_custom_call.1} parent=1 // pred_check_branch
      %32 = sbr.rel (0) target = $region17
    $region16: #{tpu_custom_call.1} parent=1 // pred_region
      %s33 = sadd.s32 0, 0
      %p34 = scmp.lt.s32.totalorder %s33, 0
      %s35 = scalar_select %p34, %s33, 0
      %s36 = smul.addr %s35, 8
      %s37 = scalar_lea.vmem %s3, %s36
      %s38 = sadd.s32 0, 0
    $region17: #{tpu_custom_call.1} parent=1 // pred_fallthru
      _
    // Predicated region
    $region18: #{tpu_custom_call.1} parent=1 // pred_check
      _
    $region19: #{tpu_custom_call.1} parent=1 // pred_check_branch
      %40 = sbr.rel (0) target = $region21
    $region20: #{tpu_custom_call.1} parent=1 // pred_region
      %s41 = sadd.s32 0, 0
      %p42 = scmp.lt.s32.totalorder %s41, 0
      %s43 = scalar_select %p42, %s41, 0
      %s44 = smul.addr %s43, 8
      %s45 = scalar_lea.vmem %s4, %s44
      %s46 = sadd.s32 0, 0
    $region21: #{tpu_custom_call.1} parent=1 // pred_fallthru
      _
    // Predicated region
    $region22: #{tpu_custom_call.1} parent=1 // pred_check
      _
    $region23: #{tpu_custom_call.1} parent=1 // pred_check_branch
      %48 = sbr.rel (0) target = $region25
    $region24: #{tpu_custom_call.1} parent=1 // pred_region
      %s49 = sadd.s32 0, 0
      %p50 = scmp.lt.s32.totalorder %s49, 0
      %s51 = scalar_select %p50, %s49, 0
      %s52 = smul.addr %s51, 8
      %s53 = scalar_lea.vmem %s5, %s52
      %s54 = sadd.s32 0, 0
    $region25: #{tpu_custom_call.1} parent=1 // pred_fallthru
      _
    // Predicated region
    $region26: #{tpu_custom_call.1} parent=1 // pred_check
      _
    $region27: #{tpu_custom_call.1} parent=1 // pred_check_branch
      %56 = sbr.rel (0) target = $region29
    $region28: #{tpu_custom_call.1} parent=1 // pred_region
      %s57 = sadd.s32 0, 0
      %p58 = scmp.lt.s32.totalorder %s57, 0
      %s59 = scalar_select %p58, %s57, 0
      %s60 = smul.addr %s59, 8
      %s61 = scalar_lea.vmem %s6, %s60
      %s62 = sadd.s32 0, 0
    $region29: #{tpu_custom_call.1} parent=1 // pred_fallthru
      _
    %s63 = sadd.s32 0, 0
    %p64 = scmp.lt.s32.totalorder %s63, 0
    %s65 = scalar_select %p64, %s63, 0
    %s66 = smul.addr %s65, 8
    %s67 = scalar_lea.vmem %s2, %s66
    %s68 = sadd.s32 0, 0
    %p69 = scmp.lt.s32.totalorder %s68, 0
    %s70 = scalar_select %p69, %s68, 0
    %s71 = smul.addr %s70, 8
    %s72 = scalar_lea.vmem %s3, %s71
    %s73 = sadd.s32 0, 0
    %p74 = scmp.lt.s32.totalorder %s73, 0
    %s75 = scalar_select %p74, %s73, 0
    %s76 = smul.addr %s75, 8
    %s77 = scalar_lea.vmem %s4, %s76
    %s78 = sadd.s32 0, 0
    %p79 = scmp.lt.s32.totalorder %s78, 0
    %s80 = scalar_select %p79, %s78, 0
    %s81 = smul.addr %s80, 8
    %s82 = scalar_lea.vmem %s5, %s81
    %s83 = sadd.s32 0, 0
    %p84 = scmp.lt.s32.totalorder %s83, 0
    %s85 = scalar_select %p84, %s83, 0
    %s86 = smul.addr %s85, 8
    %s87 = scalar_lea.vmem %s6, %s86
    %s88 = sadd.s32 0, 0
    %p89 = scmp.lt.s32.totalorder %s88, 0
    %s90 = scalar_select %p89, %s88, 0
    %s91 = smul.addr %s90, 8
    %s92 = scalar_lea.vmem %s2, %s91
    %s93 = sadd.s32 0, 0
    %s94 = sadd.s32 0, 0
    %p95 = scmp.lt.s32.totalorder %s94, 0
    %s96 = scalar_select %p95, %s94, 0
    %s97 = smul.addr %s96, 8
    %s98 = scalar_lea.vmem %s3, %s97
    %s99 = sadd.s32 0, 0
    %s100 = sadd.s32 0, 0
    %p101 = scmp.lt.s32.totalorder %s100, 0
    %s102 = scalar_select %p101, %s100, 0
    %s103 = smul.addr %s102, 8
    %s104 = scalar_lea.vmem %s4, %s103
    %s105 = sadd.s32 0, 0
    %s106 = sadd.s32 0, 0
    %p107 = scmp.lt.s32.totalorder %s106, 0
    %s108 = scalar_select %p107, %s106, 0
    %s109 = smul.addr %s108, 8
    %s110 = scalar_lea.vmem %s5, %s109
    %s111 = sadd.s32 0, 0
    %s112 = sadd.s32 0, 0
    %p113 = scmp.lt.s32.totalorder %s112, 0
    %s114 = scalar_select %p113, %s112, 0
    %s115 = smul.addr %s114, 8
    %s116 = scalar_lea.vmem %s6, %s115
    %s117 = sadd.s32 0, 0
    %p118 = scmp.eq.s32.totalorder 0, 0
    // Predicated region
    $region30: #{tpu_custom_call.1} parent=1 // pred_check
      %p119 = pneg %p118
    $region31: #{tpu_custom_call.1} parent=1 // pred_check_branch
      %121 = sbr.rel (%p119) target = $region33
    $region32: #{tpu_custom_call.1} parent=1 // pred_region
      %p123 = scmp.lt.u32.totalorder 32, 8
      %p124 = pneg %p123
      // Predicated region
      $region34: #{tpu_custom_call.1} parent=32 // pred_check
        _
      $region35: #{tpu_custom_call.1} parent=32 // pred_check_branch
        %126 = sbr.rel (%p123) target = $region37
      $region36: #{tpu_custom_call.1} parent=32 // pred_region
        %s141 = sand.u32 32, 7
        %p142 = scmp.eq.s32.totalorder %s141, 0
        // Predicated region
        $region49: #{tpu_custom_call.1} parent=36 // pred_check
          %p143 = pneg %p142
        $region50: #{tpu_custom_call.1} parent=36 // pred_check_branch
          %145 = sbr.rel (%p143) target = $region52
        $region51: #{tpu_custom_call.1} parent=36 // pred_region
          loop: start=0, step=1, limit=1
          $region53: #{tpu_custom_call.1} parent=51 // loop_pre_header
            _
          $region54: #{tpu_custom_call.1} parent=51 // loop_header
            %s147 = sphi 0, %s151
            %p148 = scmp.ge.s32.totalorder %s147, 1
            %s152 = sphi %s7, %s7
            %s153 = sphi [#allocation2], [#allocation2]
          $region55: #{tpu_custom_call.1} parent=51 // loop_header_branch
            %150 = sbr.rel (%p148) target = $region59
          $region56: #{tpu_custom_call.1} parent=51 // loop_body
            %v154 = vld [vmem:[%s152] sm:$0xff]
            %155 = vst [vmem:[%s153] sm:$0xff] %v154
            %v156 = vld [vmem:[%s152 + $0x8] sm:$0xff]
            %157 = vst [vmem:[%s153 + $0x8] sm:$0xff] %v156
            %v158 = vld [vmem:[%s152 + $0x10] sm:$0xff]
            %159 = vst [vmem:[%s153 + $0x10] sm:$0xff] %v158
            %v160 = vld [vmem:[%s152 + $0x18] sm:$0xff]
            %161 = vst [vmem:[%s153 + $0x18] sm:$0xff] %v160
          $region57: #{tpu_custom_call.1} parent=51 // loop_footer
            %s151 = sadd.s32 1, %s147
          $region58: #{tpu_custom_call.1} parent=51 // loop_footer_branch
            %146 = sbr.rel target = $region54
          $region59: #{tpu_custom_call.1} parent=51 // loop_exit
            _
        $region52: #{tpu_custom_call.1} parent=36 // pred_fallthru
          _
        %p162 = pneg %p142
        // Predicated region
        $region60: #{tpu_custom_call.1} parent=36 // pred_check
          _
        $region61: #{tpu_custom_call.1} parent=36 // pred_check_branch
          %164 = sbr.rel (%p142) target = $region63
        $region62: #{tpu_custom_call.1} parent=36 // pred_region
          %s165 = sand.u32 32, 7
        $region63: #{tpu_custom_call.1} parent=36 // pred_fallthru
          _
      $region37: #{tpu_custom_call.1} parent=32 // pred_fallthru
        _
      // Predicated region
      $region38: #{tpu_custom_call.1} parent=32 // pred_check
        %p127 = pneg %p123
      $region39: #{tpu_custom_call.1} parent=32 // pred_check_branch
        %129 = sbr.rel (%p127) target = $region41
      $region40: #{tpu_custom_call.1} parent=32 // pred_region
        %s130 = sshllo.u32 0, 32
        loop: start=0, step=1, limit=1
        $region42: #{tpu_custom_call.1} parent=40 // loop_pre_header
          _
        $region43: #{tpu_custom_call.1} parent=40 // loop_header
          %s132 = sphi 0, %s136
          %p133 = scmp.ge.s32.totalorder %s132, 1
          %s137 = sphi %s7, %s7
          %s138 = sphi [#allocation2], [#allocation2]
        $region44: #{tpu_custom_call.1} parent=40 // loop_header_branch
          %135 = sbr.rel (%p133) target = $region48
        $region45: #{tpu_custom_call.1} parent=40 // loop_body
          %v139 = vld [vmem:[%s137] sm:%s130]
          %140 = vst [vmem:[%s138] sm:%s130] %v139
        $region46: #{tpu_custom_call.1} parent=40 // loop_footer
          %s136 = sadd.s32 1, %s132
        $region47: #{tpu_custom_call.1} parent=40 // loop_footer_branch
          %131 = sbr.rel target = $region43
        $region48: #{tpu_custom_call.1} parent=40 // loop_exit
          _
      $region41: #{tpu_custom_call.1} parent=32 // pred_fallthru
        _
      // Predicated region
      $region64: #{tpu_custom_call.1} parent=32 // pred_check
        _
      $region65: #{tpu_custom_call.1} parent=32 // pred_check_branch
        %168 = sbr.rel (0) target = $region67
      $region66: #{tpu_custom_call.1} parent=32 // pred_region
        %169 = vsyncadd [#allocation7], 512
      $region67: #{tpu_custom_call.1} parent=32 // pred_fallthru
        _
      %s170 = scalar_lea.sflag [#allocation7], 1
      %p172 = scmp.lt.u32.totalorder 32, 8
      %p173 = pneg %p172
      // Predicated region
      $region68: #{tpu_custom_call.1} parent=32 // pred_check
        _
      $region69: #{tpu_custom_call.1} parent=32 // pred_check_branch
        %175 = sbr.rel (%p172) target = $region71
      $region70: #{tpu_custom_call.1} parent=32 // pred_region
        %s190 = sand.u32 32, 7
        %p191 = scmp.eq.s32.totalorder %s190, 0
        // Predicated region
        $region83: #{tpu_custom_call.1} parent=70 // pred_check
          %p192 = pneg %p191
        $region84: #{tpu_custom_call.1} parent=70 // pred_check_branch
          %194 = sbr.rel (%p192) target = $region86
        $region85: #{tpu_custom_call.1} parent=70 // pred_region
          loop: start=0, step=1, limit=1
          $region87: #{tpu_custom_call.1} parent=85 // loop_pre_header
            _
          $region88: #{tpu_custom_call.1} parent=85 // loop_header
            %s196 = sphi 0, %s200
            %p197 = scmp.ge.s32.totalorder %s196, 1
            %s201 = sphi %s8, %s8
            %s202 = sphi [#allocation3], [#allocation3]
          $region89: #{tpu_custom_call.1} parent=85 // loop_header_branch
            %199 = sbr.rel (%p197) target = $region93
          $region90: #{tpu_custom_call.1} parent=85 // loop_body
            %v203 = vld [vmem:[%s201] sm:$0xff]
            %204 = vst [vmem:[%s202] sm:$0xff] %v203
            %v205 = vld [vmem:[%s201 + $0x8] sm:$0xff]
            %206 = vst [vmem:[%s202 + $0x8] sm:$0xff] %v205
            %v207 = vld [vmem:[%s201 + $0x10] sm:$0xff]
            %208 = vst [vmem:[%s202 + $0x10] sm:$0xff] %v207
            %v209 = vld [vmem:[%s201 + $0x18] sm:$0xff]
            %210 = vst [vmem:[%s202 + $0x18] sm:$0xff] %v209
          $region91: #{tpu_custom_call.1} parent=85 // loop_footer
            %s200 = sadd.s32 1, %s196
          $region92: #{tpu_custom_call.1} parent=85 // loop_footer_branch
            %195 = sbr.rel target = $region88
          $region93: #{tpu_custom_call.1} parent=85 // loop_exit
            _
        $region86: #{tpu_custom_call.1} parent=70 // pred_fallthru
          _
        %p211 = pneg %p191
        // Predicated region
        $region94: #{tpu_custom_call.1} parent=70 // pred_check
          _
        $region95: #{tpu_custom_call.1} parent=70 // pred_check_branch
          %213 = sbr.rel (%p191) target = $region97
        $region96: #{tpu_custom_call.1} parent=70 // pred_region
          %s214 = sand.u32 32, 7
        $region97: #{tpu_custom_call.1} parent=70 // pred_fallthru
          _
      $region71: #{tpu_custom_call.1} parent=32 // pred_fallthru
        _
      // Predicated region
      $region72: #{tpu_custom_call.1} parent=32 // pred_check
        %p176 = pneg %p172
      $region73: #{tpu_custom_call.1} parent=32 // pred_check_branch
        %178 = sbr.rel (%p176) target = $region75
      $region74: #{tpu_custom_call.1} parent=32 // pred_region
        %s179 = sshllo.u32 0, 32
        loop: start=0, step=1, limit=1
        $region76: #{tpu_custom_call.1} parent=74 // loop_pre_header
          _
        $region77: #{tpu_custom_call.1} parent=74 // loop_header
          %s181 = sphi 0, %s185
          %p182 = scmp.ge.s32.totalorder %s181, 1
          %s186 = sphi %s8, %s8
          %s187 = sphi [#allocation3], [#allocation3]
        $region78: #{tpu_custom_call.1} parent=74 // loop_header_branch
          %184 = sbr.rel (%p182) target = $region82
        $region79: #{tpu_custom_call.1} parent=74 // loop_body
          %v188 = vld [vmem:[%s186] sm:%s179]
          %189 = vst [vmem:[%s187] sm:%s179] %v188
        $region80: #{tpu_custom_call.1} parent=74 // loop_footer
          %s185 = sadd.s32 1, %s181
        $region81: #{tpu_custom_call.1} parent=74 // loop_footer_branch
          %180 = sbr.rel target = $region77
        $region82: #{tpu_custom_call.1} parent=74 // loop_exit
          _
      $region75: #{tpu_custom_call.1} parent=32 // pred_fallthru
        _
      // Predicated region
      $region98: #{tpu_custom_call.1} parent=32 // pred_check
        _
      $region99: #{tpu_custom_call.1} parent=32 // pred_check_branch
        %217 = sbr.rel (0) target = $region101
      $region100: #{tpu_custom_call.1} parent=32 // pred_region
        %218 = vsyncadd %s170, 512
      $region101: #{tpu_custom_call.1} parent=32 // pred_fallthru
        _
      %s219 = scalar_lea.sflag [#allocation7], 2
      %p221 = scmp.lt.u32.totalorder 32, 8
      %p222 = pneg %p221
      // Predicated region
      $region102: #{tpu_custom_call.1} parent=32 // pred_check
        _
      $region103: #{tpu_custom_call.1} parent=32 // pred_check_branch
        %224 = sbr.rel (%p221) target = $region105
      $region104: #{tpu_custom_call.1} parent=32 // pred_region
        %s239 = sand.u32 32, 7
        %p240 = scmp.eq.s32.totalorder %s239, 0
        // Predicated region
        $region117: #{tpu_custom_call.1} parent=104 // pred_check
          %p241 = pneg %p240
        $region118: #{tpu_custom_call.1} parent=104 // pred_check_branch
          %243 = sbr.rel (%p241) target = $region120
        $region119: #{tpu_custom_call.1} parent=104 // pred_region
          loop: start=0, step=1, limit=1
          $region121: #{tpu_custom_call.1} parent=119 // loop_pre_header
            _
          $region122: #{tpu_custom_call.1} parent=119 // loop_header
            %s245 = sphi 0, %s249
            %p246 = scmp.ge.s32.totalorder %s245, 1
            %s250 = sphi %s9, %s9
            %s251 = sphi [#allocation4], [#allocation4]
          $region123: #{tpu_custom_call.1} parent=119 // loop_header_branch
            %248 = sbr.rel (%p246) target = $region127
          $region124: #{tpu_custom_call.1} parent=119 // loop_body
            %v252 = vld [vmem:[%s250] sm:$0xff]
            %253 = vst [vmem:[%s251] sm:$0xff] %v252
            %v254 = vld [vmem:[%s250 + $0x8] sm:$0xff]
            %255 = vst [vmem:[%s251 + $0x8] sm:$0xff] %v254
            %v256 = vld [vmem:[%s250 + $0x10] sm:$0xff]
            %257 = vst [vmem:[%s251 + $0x10] sm:$0xff] %v256
            %v258 = vld [vmem:[%s250 + $0x18] sm:$0xff]
            %259 = vst [vmem:[%s251 + $0x18] sm:$0xff] %v258
          $region125: #{tpu_custom_call.1} parent=119 // loop_footer
            %s249 = sadd.s32 1, %s245
          $region126: #{tpu_custom_call.1} parent=119 // loop_footer_branch
            %244 = sbr.rel target = $region122
          $region127: #{tpu_custom_call.1} parent=119 // loop_exit
            _
        $region120: #{tpu_custom_call.1} parent=104 // pred_fallthru
          _
        %p260 = pneg %p240
        // Predicated region
        $region128: #{tpu_custom_call.1} parent=104 // pred_check
          _
        $region129: #{tpu_custom_call.1} parent=104 // pred_check_branch
          %262 = sbr.rel (%p240) target = $region131
        $region130: #{tpu_custom_call.1} parent=104 // pred_region
          %s263 = sand.u32 32, 7
        $region131: #{tpu_custom_call.1} parent=104 // pred_fallthru
          _
      $region105: #{tpu_custom_call.1} parent=32 // pred_fallthru
        _
      // Predicated region
      $region106: #{tpu_custom_call.1} parent=32 // pred_check
        %p225 = pneg %p221
      $region107: #{tpu_custom_call.1} parent=32 // pred_check_branch
        %227 = sbr.rel (%p225) target = $region109
      $region108: #{tpu_custom_call.1} parent=32 // pred_region
        %s228 = sshllo.u32 0, 32
        loop: start=0, step=1, limit=1
        $region110: #{tpu_custom_call.1} parent=108 // loop_pre_header
          _
        $region111: #{tpu_custom_call.1} parent=108 // loop_header
          %s230 = sphi 0, %s234
          %p231 = scmp.ge.s32.totalorder %s230, 1
          %s235 = sphi %s9, %s9
          %s236 = sphi [#allocation4], [#allocation4]
        $region112: #{tpu_custom_call.1} parent=108 // loop_header_branch
          %233 = sbr.rel (%p231) target = $region116
        $region113: #{tpu_custom_call.1} parent=108 // loop_body
          %v237 = vld [vmem:[%s235] sm:%s228]
          %238 = vst [vmem:[%s236] sm:%s228] %v237
        $region114: #{tpu_custom_call.1} parent=108 // loop_footer
          %s234 = sadd.s32 1, %s230
        $region115: #{tpu_custom_call.1} parent=108 // loop_footer_branch
          %229 = sbr.rel target = $region111
        $region116: #{tpu_custom_call.1} parent=108 // loop_exit
          _
      $region109: #{tpu_custom_call.1} parent=32 // pred_fallthru
        _
      // Predicated region
      $region132: #{tpu_custom_call.1} parent=32 // pred_check
        _
      $region133: #{tpu_custom_call.1} parent=32 // pred_check_branch
        %266 = sbr.rel (0) target = $region135
      $region134: #{tpu_custom_call.1} parent=32 // pred_region
        %267 = vsyncadd %s219, 512
      $region135: #{tpu_custom_call.1} parent=32 // pred_fallthru
        _
      %s268 = smul.u32 32, 1
      %s269 = sshll.u32 %s268, 4
      %270 = dma.done [#allocation7], %s269
      %s271 = sshll.u32 %s268, 4
      %272 = dma.done %s170, %s271
      %s273 = sshll.u32 %s268, 4
      %274 = dma.done %s219, %s273
      %vm275 = vcmask 0
      %276 = vst.msk [vmem:[#allocation5] sm:$0x1] %vm275, 0.0
      %277 = vst.msk [vmem:[#allocation6] sm:$0x1] %vm275, 0.0
    $region33: #{tpu_custom_call.1} parent=1 // pred_fallthru
      _
    %v278 = vld [vmem:[%s92] sm:$0xff]
    %v279 = vld [vmem:[%s98] sm:$0xff]
    %v280 = vld [vmem:[%s104] sm:$0xff]
    %v281 = vld [vmem:[%s110] sm:$0xff]
    %v282 = vld [vmem:[%s116] sm:$0xff]
    %v283 = vmul.f32 %v279, %v278
    %vm284 = vcmask 261120
    %v285 = vsel %vm284, %v283, 0.0
    %286 = vadd.xlane.f32.xlu0 %v285
    %v287 = vpop.xlane.xlu0 %286
    %v288 = vmul.f32 %v281, %v287
    %v289 = vmul.f32 %v280, %v287
    %v290 = vld [vmem:[#allocation4] sm:$0xff]
    %v291 = vld [vmem:[#allocation4 + $0x8] sm:$0xff]
    %v292 = vld [vmem:[#allocation4 + $0x10] sm:$0xff]
    %v293 = vld [vmem:[#allocation4 + $0x18] sm:$0xff]
    %v295 = vsel %vm284, %v278, 0
    %297 = vmatprep.subr.mxu0 0.0
    %298 = vmatpush1.msra.mxu0 %v290
    %299 = vmatprep.subr.mxu0 0.0
    %300 = vmatpush1.msra.mxu0 %v291
    %301 = vmatprep.subr.mxu0 0.0
    %302 = vmatpush1.msra.mxu0 %v292
    %303 = vmatprep.subr.mxu0 0.0
    %304 = vmatpush1.msra.mxu0 %v293
    %305 = vmatprep.subr.mxu0 0.0
    %306 = vmatpush1.msra.mxu0 0.0
    %307 = vmatprep.subr.mxu0 0.0
    %308 = vmatpush1.msra.mxu0 0.0
    %309 = vmatprep.subr.mxu0 0.0
    %310 = vmatpush1.msra.mxu0 0.0
    %311 = vmatprep.subr.mxu0 0.0
    %312 = vmatpush1.msra.mxu0 0.0
    %313 = vmatprep.subr.mxu0 0.0
    %314 = vmatpush1.msra.mxu0 0.0
    %315 = vmatprep.subr.mxu0 0.0
    %316 = vmatpush1.msra.mxu0 0.0
    %317 = vmatprep.subr.mxu0 0.0
    %318 = vmatpush1.msra.mxu0 0.0
    %319 = vmatprep.subr.mxu0 0.0
    %320 = vmatpush1.msra.mxu0 0.0
    %321 = vmatprep.subr.mxu0 0.0
    %322 = vmatpush1.msra.mxu0 0.0
    %323 = vmatprep.subr.mxu0 0.0
    %324 = vmatpush1.msra.mxu0 0.0
    %325 = vmatprep.subr.mxu0 0.0
    %326 = vmatpush1.msra.mxu0 0.0
    %327 = vmatprep.subr.mxu0 0.0
    %328 = vmatpush1.msra.mxu0 0.0
    %329 = vmatprep.subr.mxu0 0.0
    %330 = vmatpush1.msra.mxu0 0.0
    %331 = vmatprep.subr.mxu0 0.0
    %332 = vmatpush1.msra.mxu0 0.0
    %333 = vmatprep.subr.mxu0 0.0
    %334 = vmatpush1.msra.mxu0 0.0
    %335 = vmatprep.subr.mxu0 0.0
    %336 = vmatpush1.msra.mxu0 0.0
    %337 = vmatprep.subr.mxu0 0.0
    %338 = vmatpush1.msra.mxu0 0.0
    %339 = vmatprep.subr.mxu0 0.0
    %340 = vmatpush1.msra.mxu0 0.0
    %341 = vmatprep.subr.mxu0 0.0
    %342 = vmatpush1.msra.mxu0 0.0
    %343 = vmatprep.subr.mxu0 0.0
    %344 = vmatpush1.msra.mxu0 0.0
    %345 = vmatprep.subr.mxu0 0.0
    %346 = vmatpush1.msra.mxu0 0.0
    %347 = vmatprep.subr.mxu0 0.0
    %348 = vmatpush1.msra.mxu0 0.0
    %349 = vmatprep.subr.mxu0 0.0
    %350 = vmatpush1.msra.mxu0 0.0
    %351 = vmatprep.subr.mxu0 0.0
    %352 = vmatpush1.msra.mxu0 0.0
    %353 = vmatprep.subr.mxu0 0.0
    %354 = vmatpush1.msra.mxu0 0.0
    %355 = vmatprep.subr.mxu0 0.0
    %356 = vmatpush1.msra.mxu0 0.0
    %357 = vmatprep.subr.mxu0 0.0
    %358 = vmatpush1.msra.mxu0 0.0
    %359 = vmatprep.subr.mxu0 0.0
    %360 = vmatpush1.msra.mxu0 0.0
    %361 = vmatprep.mubr.f32.mxu0 0.0
    %362 = vmatmul.mubr.f32.gmra.mrb[0].mxu0 %v295
    %v363 = vpop.f32.mrb[0].mxu0
    %v364 = vadd.f32 0.0, %v363
    %v365 = vpop.f32.mrb[0].mxu0
    %366 = vdwg.mxu0
    %v368 = vsel %vm284, %v279, 0
    %370 = vmatprep.subr.mxu0 0.0
    %371 = vmatpush1.msra.mxu0 %v290
    %372 = vmatprep.subr.mxu0 0.0
    %373 = vmatpush1.msra.mxu0 %v291
    %374 = vmatprep.subr.mxu0 0.0
    %375 = vmatpush1.msra.mxu0 %v292
    %376 = vmatprep.subr.mxu0 0.0
    %377 = vmatpush1.msra.mxu0 %v293
    %378 = vmatprep.subr.mxu0 0.0
    %379 = vmatpush1.msra.mxu0 0.0
    %380 = vmatprep.subr.mxu0 0.0
    %381 = vmatpush1.msra.mxu0 0.0
    %382 = vmatprep.subr.mxu0 0.0
    %383 = vmatpush1.msra.mxu0 0.0
    %384 = vmatprep.subr.mxu0 0.0
    %385 = vmatpush1.msra.mxu0 0.0
    %386 = vmatprep.subr.mxu0 0.0
    %387 = vmatpush1.msra.mxu0 0.0
    %388 = vmatprep.subr.mxu0 0.0
    %389 = vmatpush1.msra.mxu0 0.0
    %390 = vmatprep.subr.mxu0 0.0
    %391 = vmatpush1.msra.mxu0 0.0
    %392 = vmatprep.subr.mxu0 0.0
    %393 = vmatpush1.msra.mxu0 0.0
    %394 = vmatprep.subr.mxu0 0.0
    %395 = vmatpush1.msra.mxu0 0.0
    %396 = vmatprep.subr.mxu0 0.0
    %397 = vmatpush1.msra.mxu0 0.0
    %398 = vmatprep.subr.mxu0 0.0
    %399 = vmatpush1.msra.mxu0 0.0
    %400 = vmatprep.subr.mxu0 0.0
    %401 = vmatpush1.msra.mxu0 0.0
    %402 = vmatprep.subr.mxu0 0.0
    %403 = vmatpush1.msra.mxu0 0.0
    %404 = vmatprep.subr.mxu0 0.0
    %405 = vmatpush1.msra.mxu0 0.0
    %406 = vmatprep.subr.mxu0 0.0
    %407 = vmatpush1.msra.mxu0 0.0
    %408 = vmatprep.subr.mxu0 0.0
    %409 = vmatpush1.msra.mxu0 0.0
    %410 = vmatprep.subr.mxu0 0.0
    %411 = vmatpush1.msra.mxu0 0.0
    %412 = vmatprep.subr.mxu0 0.0
    %413 = vmatpush1.msra.mxu0 0.0
    %414 = vmatprep.subr.mxu0 0.0
    %415 = vmatpush1.msra.mxu0 0.0
    %416 = vmatprep.subr.mxu0 0.0
    %417 = vmatpush1.msra.mxu0 0.0
    %418 = vmatprep.subr.mxu0 0.0
    %419 = vmatpush1.msra.mxu0 0.0
    %420 = vmatprep.subr.mxu0 0.0
    %421 = vmatpush1.msra.mxu0 0.0
    %422 = vmatprep.subr.mxu0 0.0
    %423 = vmatpush1.msra.mxu0 0.0
    %424 = vmatprep.subr.mxu0 0.0
    %425 = vmatpush1.msra.mxu0 0.0
    %426 = vmatprep.subr.mxu0 0.0
    %427 = vmatpush1.msra.mxu0 0.0
    %428 = vmatprep.subr.mxu0 0.0
    %429 = vmatpush1.msra.mxu0 0.0
    %430 = vmatprep.subr.mxu0 0.0
    %431 = vmatpush1.msra.mxu0 0.0
    %432 = vmatprep.subr.mxu0 0.0
    %433 = vmatpush1.msra.mxu0 0.0
    %434 = vmatprep.mubr.f32.mxu0 0.0
    %435 = vmatmul.mubr.f32.gmra.mrb[0].mxu0 %v368
    %v436 = vpop.f32.mrb[0].mxu0
    %v437 = vadd.f32 0.0, %v436
    %v438 = vpop.f32.mrb[0].mxu0
    %439 = vdwg.mxu0
    %441 = vset.pattern.permute.xlu0 0
    %442 = vperm.xlu0 %441, %v288
    %v443 = vpop.permute.xlu0 %442
    %v445 = vmul.f32 %v443, %v364
    %447 = vset.pattern.permute.xlu0 0
    %448 = vperm.xlu0 %447, %v289
    %v449 = vpop.permute.xlu0 %448
    %v451 = vmul.f32 %v449, %v437
    %v452 = vlaneseq
    %v453 = vand.u32 %v452, 127
    %454 = vset.pattern.permute.xlu0 0
    %455 = vperm.xlu0 %454, %v282
    %v456 = vpop.permute.xlu0 %455
    %vm457 = vcmp.eq.s32.totalorder %v453, %v456
    %v458 = vsel %vm457, 1, 0
    %v459 = vcvt.s32.f32 %v458
    %vm460 = vcmp.lt.s32.totalorder %v453, 8
    %v461 = vsel %vm460, %v445, -1e+30
    %462 = vmax.xlane.f32.xlu0 %v461
    %v463 = vpop.xlane.xlu0 %462
    %v464 = vsub.f32 %v461, %v463
    %v465 = vmul.f32 %v464, 1.442695
    %v466 = vpow.pop %v465
    %467 = vadd.xlane.f32.xlu0 %v466
    %v468 = vpop.xlane.xlu0 %467
    %v469 = vlog2.pop %v468
    %v470 = vmul.f32 %v469, 0.6931472
    %v471 = vadd.f32 %v463, %v470
    %v472 = vmul.f32 %v459, %v461
    %473 = vadd.xlane.f32.xlu0 %v472
    %v474 = vpop.xlane.xlu0 %473
    %v475 = vsub.f32 %v471, %v474
    %v476 = vrot.slane %v475, 4
    %v477 = vadd.f32 %v475, %v476
    %v478 = vrot.slane %v477, 2
    %v479 = vadd.f32 %v477, %v478
    %v480 = vrot.slane %v479, 1
    %v481 = vadd.f32 %v479, %v480
    %v482 = vsel %vm460, %v451, -1e+30
    %483 = vmax.xlane.f32.xlu0 %v482
    %v484 = vpop.xlane.xlu0 %483
    %v485 = vsub.f32 %v482, %v484
    %v486 = vmul.f32 %v485, 1.442695
    %v487 = vpow.pop %v486
    %488 = vadd.xlane.f32.xlu0 %v487
    %v489 = vpop.xlane.xlu0 %488
    %v490 = vlog2.pop %v489
    %v491 = vmul.f32 %v490, 0.6931472
    %v492 = vadd.f32 %v484, %v491
    %v493 = vmul.f32 %v459, %v482
    %494 = vadd.xlane.f32.xlu0 %v493
    %v495 = vpop.xlane.xlu0 %494
    %v496 = vsub.f32 %v492, %v495
    %v497 = vrot.slane %v496, 4
    %v498 = vadd.f32 %v496, %v497
    %v499 = vrot.slane %v498, 2
    %v500 = vadd.f32 %v498, %v499
    %v501 = vrot.slane %v500, 1
    %v502 = vadd.f32 %v500, %v501
    %v503 = vadd.f32 %v481, %v502
    %v504 = vld [vmem:[%s0] sm:$0x1]
    %v505 = vlaneseq
    %v506 = vshrl.u32 %v505, 7
    %v507 = vsub.s32 0, %v506
    %v508 = vrot.slane %v504, %v507
    %vm509 = vcmp.eq.s32.totalorder %v456, %v508
    %v510 = vld [vmem:[%s1] sm:$0x1]
    %v512 = vlaneseq
    %v513 = vshrl.u32 %v512, 7
    %v514 = vsub.s32 0, %v513
    %v515 = vrot.slane %v510, %v514
    %v517 = vsel %vm509, %v515, -18.420681
    %v518 = vld [vmem:[#allocation2] sm:$0xff]
    %v519 = vld [vmem:[#allocation2 + $0x8] sm:$0xff]
    %v520 = vld [vmem:[#allocation2 + $0x10] sm:$0xff]
    %v521 = vld [vmem:[#allocation2 + $0x18] sm:$0xff]
    %522 = vmatprep.subr.mxu0 0.0
    %523 = vmatpush1.msra.mxu0 %v518
    %524 = vmatprep.subr.mxu0 0.0
    %525 = vmatpush1.msra.mxu0 %v519
    %526 = vmatprep.subr.mxu0 0.0
    %527 = vmatpush1.msra.mxu0 %v520
    %528 = vmatprep.subr.mxu0 0.0
    %529 = vmatpush1.msra.mxu0 %v521
    %530 = vmatprep.subr.mxu0 0.0
    %531 = vmatpush1.msra.mxu0 0.0
    %532 = vmatprep.subr.mxu0 0.0
    %533 = vmatpush1.msra.mxu0 0.0
    %534 = vmatprep.subr.mxu0 0.0
    %535 = vmatpush1.msra.mxu0 0.0
    %536 = vmatprep.subr.mxu0 0.0
    %537 = vmatpush1.msra.mxu0 0.0
    %538 = vmatprep.subr.mxu0 0.0
    %539 = vmatpush1.msra.mxu0 0.0
    %540 = vmatprep.subr.mxu0 0.0
    %541 = vmatpush1.msra.mxu0 0.0
    %542 = vmatprep.subr.mxu0 0.0
    %543 = vmatpush1.msra.mxu0 0.0
    %544 = vmatprep.subr.mxu0 0.0
    %545 = vmatpush1.msra.mxu0 0.0
    %546 = vmatprep.subr.mxu0 0.0
    %547 = vmatpush1.msra.mxu0 0.0
    %548 = vmatprep.subr.mxu0 0.0
    %549 = vmatpush1.msra.mxu0 0.0
    %550 = vmatprep.subr.mxu0 0.0
    %551 = vmatpush1.msra.mxu0 0.0
    %552 = vmatprep.subr.mxu0 0.0
    %553 = vmatpush1.msra.mxu0 0.0
    %554 = vmatprep.subr.mxu0 0.0
    %555 = vmatpush1.msra.mxu0 0.0
    %556 = vmatprep.subr.mxu0 0.0
    %557 = vmatpush1.msra.mxu0 0.0
    %558 = vmatprep.subr.mxu0 0.0
    %559 = vmatpush1.msra.mxu0 0.0
    %560 = vmatprep.subr.mxu0 0.0
    %561 = vmatpush1.msra.mxu0 0.0
    %562 = vmatprep.subr.mxu0 0.0
    %563 = vmatpush1.msra.mxu0 0.0
    %564 = vmatprep.subr.mxu0 0.0
    %565 = vmatpush1.msra.mxu0 0.0
    %566 = vmatprep.subr.mxu0 0.0
    %567 = vmatpush1.msra.mxu0 0.0
    %568 = vmatprep.subr.mxu0 0.0
    %569 = vmatpush1.msra.mxu0 0.0
    %570 = vmatprep.subr.mxu0 0.0
    %571 = vmatpush1.msra.mxu0 0.0
    %572 = vmatprep.subr.mxu0 0.0
    %573 = vmatpush1.msra.mxu0 0.0
    %574 = vmatprep.subr.mxu0 0.0
    %575 = vmatpush1.msra.mxu0 0.0
    %576 = vmatprep.subr.mxu0 0.0
    %577 = vmatpush1.msra.mxu0 0.0
    %578 = vmatprep.subr.mxu0 0.0
    %579 = vmatpush1.msra.mxu0 0.0
    %580 = vmatprep.subr.mxu0 0.0
    %581 = vmatpush1.msra.mxu0 0.0
    %582 = vmatprep.subr.mxu0 0.0
    %583 = vmatpush1.msra.mxu0 0.0
    %584 = vmatprep.subr.mxu0 0.0
    %585 = vmatpush1.msra.mxu0 0.0
    %586 = vmatprep.mubr.f32.mxu0 0.0
    %587 = vmatmul.mubr.f32.gmra.mrb[0].mxu0 %v368
    %v588 = vpop.f32.mrb[0].mxu0
    %v589 = vadd.f32 0.0, %v588
    %v590 = vpop.f32.mrb[0].mxu0
    %591 = vdwg.mxu0
    %593 = vset.pattern.permute.xlu0 0
    %594 = vperm.xlu0 %593, %v281
    %v595 = vpop.permute.xlu0 %594
    %v597 = vmul.f32 %v595, %v589
    %vm598 = vcmask 64512
    %v599 = vsel %vm598, %v597, -inf
    %600 = vmax.xlane.f32.xlu0 %v599
    %v601 = vpop.xlane.xlu0 %600
    %v602 = vsub.f32 %v597, %v601
    %v603 = vmul.f32 %v602, 1.442695
    %v604 = vpow.pop %v603
    %v605 = vsel %vm598, %v604, 0.0
    %606 = vadd.xlane.f32.xlu0 %v605
    %v607 = vpop.xlane.xlu0 %606
    %v608 = vrcp.pop %v607
    %v609 = vmul.f32 %v604, %v608
    %v610 = vlog2.pop %v607
    %v611 = vmul.f32 %v610, 0.6931472
    %v612 = vsub.f32 %v602, %v611
    %v613 = vsub.f32 %v612, %v517
    %v614 = vmul.f32 %v609, %v613
    %v615 = vsel %vm598, %v614, 0.0
    %616 = vadd.xlane.f32.xlu0 %v615
    %v617 = vpop.xlane.xlu0 %616
    %v618 = vrot.slane %v617, 4
    %v619 = vadd.f32 %v617, %v618
    %v620 = vrot.slane %v619, 2
    %v621 = vadd.f32 %v619, %v620
    %v622 = vrot.slane %v621, 1
    %v623 = vadd.f32 %v621, %v622
    %v624 = vld [vmem:[#allocation3] sm:$0xff]
    %v625 = vld [vmem:[#allocation3 + $0x8] sm:$0xff]
    %v626 = vld [vmem:[#allocation3 + $0x10] sm:$0xff]
    %v627 = vld [vmem:[#allocation3 + $0x18] sm:$0xff]
    %628 = vmatprep.subr.mxu0 0.0
    %629 = vmatpush1.msra.mxu0 %v624
    %630 = vmatprep.subr.mxu0 0.0
    %631 = vmatpush1.msra.mxu0 %v625
    %632 = vmatprep.subr.mxu0 0.0
    %633 = vmatpush1.msra.mxu0 %v626
    %634 = vmatprep.subr.mxu0 0.0
    %635 = vmatpush1.msra.mxu0 %v627
    %636 = vmatprep.subr.mxu0 0.0
    %637 = vmatpush1.msra.mxu0 0.0
    %638 = vmatprep.subr.mxu0 0.0
    %639 = vmatpush1.msra.mxu0 0.0
    %640 = vmatprep.subr.mxu0 0.0
    %641 = vmatpush1.msra.mxu0 0.0
    %642 = vmatprep.subr.mxu0 0.0
    %643 = vmatpush1.msra.mxu0 0.0
    %644 = vmatprep.subr.mxu0 0.0
    %645 = vmatpush1.msra.mxu0 0.0
    %646 = vmatprep.subr.mxu0 0.0
    %647 = vmatpush1.msra.mxu0 0.0
    %648 = vmatprep.subr.mxu0 0.0
    %649 = vmatpush1.msra.mxu0 0.0
    %650 = vmatprep.subr.mxu0 0.0
    %651 = vmatpush1.msra.mxu0 0.0
    %652 = vmatprep.subr.mxu0 0.0
    %653 = vmatpush1.msra.mxu0 0.0
    %654 = vmatprep.subr.mxu0 0.0
    %655 = vmatpush1.msra.mxu0 0.0
    %656 = vmatprep.subr.mxu0 0.0
    %657 = vmatpush1.msra.mxu0 0.0
    %658 = vmatprep.subr.mxu0 0.0
    %659 = vmatpush1.msra.mxu0 0.0
    %660 = vmatprep.subr.mxu0 0.0
    %661 = vmatpush1.msra.mxu0 0.0
    %662 = vmatprep.subr.mxu0 0.0
    %663 = vmatpush1.msra.mxu0 0.0
    %664 = vmatprep.subr.mxu0 0.0
    %665 = vmatpush1.msra.mxu0 0.0
    %666 = vmatprep.subr.mxu0 0.0
    %667 = vmatpush1.msra.mxu0 0.0
    %668 = vmatprep.subr.mxu0 0.0
    %669 = vmatpush1.msra.mxu0 0.0
    %670 = vmatprep.subr.mxu0 0.0
    %671 = vmatpush1.msra.mxu0 0.0
    %672 = vmatprep.subr.mxu0 0.0
    %673 = vmatpush1.msra.mxu0 0.0
    %674 = vmatprep.subr.mxu0 0.0
    %675 = vmatpush1.msra.mxu0 0.0
    %676 = vmatprep.subr.mxu0 0.0
    %677 = vmatpush1.msra.mxu0 0.0
    %678 = vmatprep.subr.mxu0 0.0
    %679 = vmatpush1.msra.mxu0 0.0
    %680 = vmatprep.subr.mxu0 0.0
    %681 = vmatpush1.msra.mxu0 0.0
    %682 = vmatprep.subr.mxu0 0.0
    %683 = vmatpush1.msra.mxu0 0.0
    %684 = vmatprep.subr.mxu0 0.0
    %685 = vmatpush1.msra.mxu0 0.0
    %686 = vmatprep.subr.mxu0 0.0
    %687 = vmatpush1.msra.mxu0 0.0
    %688 = vmatprep.subr.mxu0 0.0
    %689 = vmatpush1.msra.mxu0 0.0
    %690 = vmatprep.subr.mxu0 0.0
    %691 = vmatpush1.msra.mxu0 0.0
    %692 = vmatprep.mubr.f32.mxu0 0.0
    %693 = vmatmul.mubr.f32.gmra.mrb[0].mxu0 %v295
    %v694 = vpop.f32.mrb[0].mxu0
    %v695 = vadd.f32 0.0, %v694
    %v696 = vpop.f32.mrb[0].mxu0
    %697 = vdwg.mxu0
    %699 = vset.pattern.permute.xlu0 0
    %700 = vperm.xlu0 %699, %v280
    %v701 = vpop.permute.xlu0 %700
    %v703 = vmul.f32 %v701, %v695
    %v704 = vsel %vm598, %v703, -inf
    %705 = vmax.xlane.f32.xlu0 %v704
    %v706 = vpop.xlane.xlu0 %705
    %v707 = vsub.f32 %v703, %v706
    %v708 = vmul.f32 %v707, 1.442695
    %v709 = vpow.pop %v708
    %v710 = vsel %vm598, %v709, 0.0
    %711 = vadd.xlane.f32.xlu0 %v710
    %v712 = vpop.xlane.xlu0 %711
    %v713 = vrcp.pop %v712
    %v714 = vmul.f32 %v709, %v713
    %v715 = vlog2.pop %v712
    %v716 = vmul.f32 %v715, 0.6931472
    %v717 = vsub.f32 %v707, %v716
    %v718 = vsub.f32 %v717, %v517
    %v719 = vmul.f32 %v714, %v718
    %v720 = vsel %vm598, %v719, 0.0
    %721 = vadd.xlane.f32.xlu0 %v720
    %v722 = vpop.xlane.xlu0 %721
    %v723 = vrot.slane %v722, 4
    %v724 = vadd.f32 %v722, %v723
    %v725 = vrot.slane %v724, 2
    %v726 = vadd.f32 %v724, %v725
    %v727 = vrot.slane %v726, 1
    %v728 = vadd.f32 %v726, %v727
    %v729 = vadd.f32 %v623, %v728
    %v730 = vld [vmem:[#allocation5] sm:$0x1]
    %v731 = vadd.f32 %v730, %v729
    %vm732 = vcmask 0
    %733 = vst.msk [vmem:[#allocation5] sm:$0x1] %vm732, %v731
    %v734 = vld [vmem:[#allocation6] sm:$0x1]
    %v735 = vadd.f32 %v734, %v503
    %736 = vst.msk [vmem:[#allocation6] sm:$0x1] %vm732, %v735
    // Predicated region
    $region136: #{tpu_custom_call.1} parent=1 // pred_check
      %p737 = pneg %p118
    $region137: #{tpu_custom_call.1} parent=1 // pred_check_branch
      %739 = sbr.rel (%p737) target = $region139
    $region138: #{tpu_custom_call.1} parent=1 // pred_region
      %v740 = vld [vmem:[#allocation5] sm:$0x1]
      %v741 = vmul.f32 %v740, 0.125
      %742 = vst.msk [vmem:[#allocation8] sm:$0x1] %vm732, %v741
      %v743 = vld [vmem:[#allocation6] sm:$0x1]
      %v744 = vmul.f32 %v743, 0.125
      %745 = vst.msk [vmem:[#allocation10] sm:$0x1] %vm732, %v744
    $region139: #{tpu_custom_call.1} parent=1 // pred_fallthru
      _
    // Predicated region
    $region140: #{tpu_custom_call.1} parent=1 // pred_check
      _
    $region141: #{tpu_custom_call.1} parent=1 // pred_check_branch
      %747 = sbr.rel (0) target = $region143
    $region142: #{tpu_custom_call.1} parent=1 // pred_region
      %s749 = ssub.s32 16, 16
      %750 = vsyncadd [#allocation9], %s749
      %s752 = sshll.u32 [#allocation8], 4
      %s753 = int_to_ptr.vmem [resolvable:$true] %s752
      %755 = dma.vmem_to_hbm [thread:$0]  %s753, 16, %s10, [#allocation9]
    $region143: #{tpu_custom_call.1} parent=1 // pred_fallthru
      _
    // Predicated region
    $region144: #{tpu_custom_call.1} parent=1 // pred_check
      _
    $region145: #{tpu_custom_call.1} parent=1 // pred_check_branch
      %757 = sbr.rel (0) target = $region147
    $region146: #{tpu_custom_call.1} parent=1 // pred_region
      %s759 = ssub.s32 16, 16
      %760 = vsyncadd [#allocation11], %s759
      %s762 = sshll.u32 [#allocation10], 4
      %s763 = int_to_ptr.vmem [resolvable:$true] %s762
      %765 = dma.vmem_to_hbm [thread:$0]  %s763, 16, %s11, [#allocation11]
    $region147: #{tpu_custom_call.1} parent=1 // pred_fallthru
      _
    // Predicated region
    $region148: #{tpu_custom_call.1} parent=1 // pred_check
      _
    $region149: #{tpu_custom_call.1} parent=1 // pred_check_branch
      %767 = sbr.rel (0) target = $region151
    $region150: #{tpu_custom_call.1} parent=1 // pred_region
      %768 = dma.done [#allocation9], 16
    $region151: #{tpu_custom_call.1} parent=1 // pred_fallthru
      _
    // Predicated region
    $region152: #{tpu_custom_call.1} parent=1 // pred_check
      _
    $region153: #{tpu_custom_call.1} parent=1 // pred_check_branch
      %770 = sbr.rel (0) target = $region155
    $region154: #{tpu_custom_call.1} parent=1 // pred_region
      %771 = dma.done [#allocation11], 16
    $region155: #{tpu_custom_call.1} parent=1 // pred_fallthru
      _
    %772 = vsyncpa [#allocation9], 1
    %773 = vsyncpa [#allocation11], 1
  %774 = vsyncmov [#allocation7]
  %s775 = vpop.sfrf %774
  %p776 = scmp.eq.s32.totalorder %s775, 0
  %p777 = pneg %p776
  %779 = shalt.err (%p777)
  %s780 = scalar_lea.sflag [#allocation7], 1
  %781 = vsyncmov %s780
  %s782 = vpop.sfrf %781
  %p783 = scmp.eq.s32.totalorder %s782, 0
  %p784 = pneg %p783
  %786 = shalt.err (%p784)
  %s787 = scalar_lea.sflag [#allocation7], 2
  %788 = vsyncmov %s787
  %s789 = vpop.sfrf %788
  %p790 = scmp.eq.s32.totalorder %s789, 0
  %p791 = pneg %p790
  %793 = shalt.err (%p791)

</llo_original>
